<compile_context>
chip_gen: v6e
topology: v6e:2x2x1
jax: 0.10.0
libtpu: 0.0.40
codegen_flags: <defaults>
</compile_context>

<pallas_src>
import functools

import jax
import jax.numpy as jnp
from jax.experimental import pallas as pl
from jax.experimental.pallas import tpu as pltpu

_SUBLANES = 8


def _round_up(x, m):
    return ((x + m - 1) // m) * m


# ----------------------------------------------------------------------------
# Kernel: fused linear -> sigmoid(x / max_std) * max_std + min_std
# ----------------------------------------------------------------------------
def _std_sigmoid_linear_kernel(x_ref, w_ref, b_ref, o_ref, *, min_std, max_std):
    pre = jnp.dot(x_ref[...], w_ref[...], preferred_element_type=jnp.float32)
    pre = pre + b_ref[...]                              # (TB, O) + (1, O), f32
    std = max_std * jax.nn.sigmoid(pre * (1.0 / max_std)) + min_std
    o_ref[...] = std.astype(o_ref.dtype)


# ----------------------------------------------------------------------------
# Parameter init (deterministic, mirrors the PyTorch __init__)
# ----------------------------------------------------------------------------
def init_params(key, num_inputs, num_outputs, *, out_gain=0.01,
                state_independent_std=False, state_independent_init=0.5):
    if state_independent_std:
        pre_std = state_independent_init * jnp.ones((1, num_outputs), jnp.float32)
        return {"pre_std": pre_std}
    # xavier_uniform_(weight, gain=out_gain); torch weight is (O, I):
    # fan_in = I, fan_out = O. Stored transposed as (I, O) for x @ W.
    bound = out_gain * (6.0 / (num_inputs + num_outputs)) ** 0.5
    w_t = jax.random.uniform(key, (num_outputs, num_inputs), jnp.float32,
                             minval=-bound, maxval=bound)
    w = jnp.transpose(w_t)
    b = jnp.zeros((1, num_outputs), jnp.float32)
    return {"w": w, "b": b}


# ----------------------------------------------------------------------------
# Wrapper
# ----------------------------------------------------------------------------
def std_layer_sigmoid(state, params, *, min_std=0.001, max_std=2.0,
                      state_independent_std=False, block_rows=2048,
                      compute_dtype=jnp.bfloat16, min_pallas_rows=2048):
    """Forward pass of StdLayerSigmoid. state: (B, num_inputs) -> (B, num_outputs)."""
    B, I = state.shape
    out_dtype = state.dtype

    # State-independent branch: a constant (1, O) row broadcast over the batch.
    # Plain JAX keeps it fused/lazy; a kernel would only add HBM writeback.
    if state_independent_std:
        pre = params["pre_std"].astype(jnp.float32)     # (1, O)
        row = max_std * jax.nn.sigmoid(pre / max_std) + min_std
        return jnp.broadcast_to(row, (B, pre.shape[1])).astype(out_dtype)

    w, b = params["w"], params["b"]                     # (I, O), (1, O)
    O = w.shape[1]

    # Small-batch fast path: launch/DMA setup dominates a one-step grid, so
    # let XLA fuse the tiny GEMM + epilogue instead.
    if B < min_pallas_rows:
        pre = (state.astype(jnp.float32) @ w.astype(jnp.float32)
               + b.astype(jnp.float32))
        return (max_std * jax.nn.sigmoid(pre / max_std) + min_std).astype(out_dtype)

    # Batch tiling: TB is a multiple of 8 (sublanes); no batch padding — the
    # boundary grid block is masked by Pallas (OOB output rows discarded).
    TB = min(_round_up(block_rows, _SUBLANES), _round_up(B, _SUBLANES))
    # Keep >= 2 grid steps when B allows it so the "parallel" batch axis can
    # shard across both v7x TensorCores.
    TB = min(TB, _round_up(pl.cdiv(B, 2), _SUBLANES))
    grid = (pl.cdiv(B, TB),)

    # Low-precision MXU inputs (f32 accumulate inside the kernel).
    x_in = state if state.dtype == compute_dtype else state.astype(compute_dtype)
    w_in = w if w.dtype == compute_dtype else w.astype(compute_dtype)
    b_in = b.astype(jnp.float32)

    kernel = functools.partial(_std_sigmoid_linear_kernel,
                               min_std=min_std, max_std=max_std)
    out = pl.pallas_call(
        kernel,
        out_shape=jax.ShapeDtypeStruct((B, O), out_dtype),
        grid=grid,
        in_specs=[
            pl.BlockSpec((TB, I), lambda i: (i, 0)),    # streamed activation
            pl.BlockSpec((I, O), lambda i: (0, 0)),     # resident weight
            pl.BlockSpec((1, O), lambda i: (0, 0)),     # resident bias
        ],
        out_specs=pl.BlockSpec((TB, O), lambda i: (i, 0)),
        compiler_params=pltpu.CompilerParams(
            dimension_semantics=("parallel",)),
    )(x_in, w_in, b_in)
    return out


# ----------------------------------------------------------------------------
# Pure-JAX reference for sanity checking
# ----------------------------------------------------------------------------
def _ref(state, params, *, min_std=0.001, max_std=2.0,
         state_independent_std=False):
    if state_independent_std:
        pre = jnp.broadcast_to(params["pre_std"],
                               (state.shape[0], params["pre_std"].shape[1]))
    else:
        pre = state @ params["w"] + params["b"]
    return max_std * jax.nn.sigmoid(pre / max_std) + min_std


if __name__ == "__main__":
    key = jax.random.PRNGKey(0)
    k_param, k_state, k_state2 = jax.random.split(key, 3)

    batch, num_inputs, num_outputs = 8, 32, 16
    state = jax.random.normal(k_state, (batch, num_inputs), jnp.float32)
    params = init_params(k_param, num_inputs, num_outputs, out_gain=0.01)

    # 1) Pallas path, f32 compute: exact check (force past the small-B fast path).
    out = std_layer_sigmoid(state, params, min_std=0.001, max_std=2.0,
                            compute_dtype=jnp.float32, min_pallas_rows=0)
    out = jax.block_until_ready(out)
    ref = _ref(state, params, min_std=0.001, max_std=2.0)
    assert out.shape == (batch, num_outputs)
    assert jnp.allclose(out, ref, atol=1e-5, rtol=1e-5)

    # 2) Pallas path, default bf16 compute (what production uses).
    out_bf = std_layer_sigmoid(state, params, min_std=0.001, max_std=2.0,
                               min_pallas_rows=0)
    out_bf = jax.block_until_ready(out_bf)
    assert out_bf.shape == (batch, num_outputs)
    assert jnp.allclose(out_bf, ref, atol=2e-3, rtol=2e-3)

    # 3) Ragged batch + multi-step grid (exercises boundary-block masking).
    batch2 = 136
    state2 = jax.random.normal(k_state2, (batch2, num_inputs), jnp.float32)
    out2 = std_layer_sigmoid(state2, params, min_std=0.001, max_std=2.0,
                             block_rows=64, min_pallas_rows=0)
    out2 = jax.block_until_ready(out2)
    ref2 = _ref(state2, params, min_std=0.001, max_std=2.0)
    assert out2.shape == (batch2, num_outputs)
    assert jnp.allclose(out2, ref2, atol=2e-3, rtol=2e-3)

    # 4) State-independent branch (plain-JAX broadcast by design).
    params_si = init_params(k_param, num_inputs, num_outputs,
                            state_independent_std=True,
                            state_independent_init=0.5)
    out_si = std_layer_sigmoid(state, params_si, state_independent_std=True)
    out_si = jax.block_until_ready(out_si)
    ref_si = _ref(state, params_si, state_independent_std=True)
    assert out_si.shape == (batch, num_outputs)
    assert jnp.allclose(out_si, ref_si, atol=1e-5, rtol=1e-5)

    print("KERNEL_OK")
</pallas_src>

<mosaic_0001>
module attributes {stable_mosaic.version = 11 : i64} {
  func.func @_std_sigmoid_linear_kernel(%arg0: i32, %arg1: memref<8x32xf32, #tpu.memory_space<vmem>>, %arg2: memref<32x16xf32, #tpu.memory_space<vmem>>, %arg3: memref<1x16xf32, #tpu.memory_space<vmem>>, %arg4: memref<8x16xf32, #tpu.memory_space<vmem>>) attributes {dimension_semantics = [#tpu.dimension_semantics<parallel>], iteration_bounds = array<i64: 1>, scalar_prefetch = 0 : i64, scratch_operands = 0 : i64, tpu.core_type = #tpu.core_type<tc>, window_params = [{transform_indices = @transform_0, window_bounds = array<i64: 8, 32>}, {pipeline_mode = #tpu.pipeline_mode<synchronous>, transform_indices = @transform_1, window_bounds = array<i64: 32, 16>}, {pipeline_mode = #tpu.pipeline_mode<synchronous>, transform_indices = @transform_2, window_bounds = array<i64: 1, 16>}, {transform_indices = @transform_3, window_bounds = array<i64: 8, 16>}]} {
    %c0 = arith.constant 0 : index
    %c0_0 = arith.constant 0 : index
    %0 = vector.load %arg1[%c0, %c0_0] : memref<8x32xf32, #tpu.memory_space<vmem>>, vector<8x32xf32>
    %c0_1 = arith.constant 0 : index
    %c0_2 = arith.constant 0 : index
    %1 = vector.load %arg2[%c0_1, %c0_2] : memref<32x16xf32, #tpu.memory_space<vmem>>, vector<32x16xf32>
    %cst = arith.constant dense<0.000000e+00> : vector<8x16xf32>
    %2 = tpu.matmul %0, %1, %cst {dimension_numbers = #tpu.dot_dimension_numbers<[1], [0], [0], [1], [0, 0, 1, 1], [], []>} : vector<8x32xf32>, vector<32x16xf32>, vector<8x16xf32> -> vector<8x16xf32>
    %c0_3 = arith.constant 0 : index
    %c0_4 = arith.constant 0 : index
    %3 = vector.load %arg3[%c0_3, %c0_4] : memref<1x16xf32, #tpu.memory_space<vmem>>, vector<1x16xf32>
    %4 = vector.broadcast %3 : vector<1x16xf32> to vector<8x16xf32>
    %5 = arith.addf %2, %4 : vector<8x16xf32>
    %cst_5 = arith.constant 5.000000e-01 : f32
    %6 = vector.broadcast %cst_5 : f32 to vector<8x16xf32>
    %7 = arith.mulf %5, %6 : vector<8x16xf32>
    %8 = arith.negf %7 : vector<8x16xf32>
    %9 = math.exp %8 : vector<8x16xf32>
    %cst_6 = arith.constant 1.000000e+00 : f32
    %10 = vector.broadcast %cst_6 : f32 to vector<8x16xf32>
    %11 = arith.addf %10, %9 : vector<8x16xf32>
    %12 = arith.divf %10, %11 : vector<8x16xf32>
    %cst_7 = arith.constant 2.000000e+00 : f32
    %13 = vector.broadcast %cst_7 : f32 to vector<8x16xf32>
    %14 = arith.mulf %13, %12 : vector<8x16xf32>
    %cst_8 = arith.constant 1.000000e-03 : f32
    %15 = vector.broadcast %cst_8 : f32 to vector<8x16xf32>
    %16 = arith.addf %14, %15 : vector<8x16xf32>
    %c0_9 = arith.constant 0 : index
    %c0_10 = arith.constant 0 : index
    %17 = vector.load %arg4[%c0_9, %c0_10] : memref<8x16xf32, #tpu.memory_space<vmem>>, vector<8x16xf32>
    tpu.vector_store %arg4[%c0_9, %c0_10], %16 {strides = array<i32>} : memref<8x16xf32, #tpu.memory_space<vmem>>, vector<8x16xf32>,
    return
  }
  func.func @transform_0(%arg0: i32) -> (i32, i32) {
    %c0_i32 = arith.constant 0 : i32
    %c0_i32_0 = arith.constant 0 : i32
    return %arg0, %c0_i32 : i32, i32
  }
  func.func @transform_1(%arg0: i32) -> (i32, i32) {
    %c0_i32 = arith.constant 0 : i32
    %c0_i32_0 = arith.constant 0 : i32
    %c0_i32_1 = arith.constant 0 : i32
    return %c0_i32, %c0_i32_0 : i32, i32
  }
  func.func @transform_2(%arg0: i32) -> (i32, i32) {
    %c0_i32 = arith.constant 0 : i32
    %c0_i32_0 = arith.constant 0 : i32
    %c0_i32_1 = arith.constant 0 : i32
    return %c0_i32, %c0_i32_0 : i32, i32
  }
  func.func @transform_3(%arg0: i32) -> (i32, i32) {
    %c0_i32 = arith.constant 0 : i32
    %c0_i32_0 = arith.constant 0 : i32
    return %arg0, %c0_i32 : i32, i32
  }
}

</mosaic_0001>

<llo_original>
// kernel: tpu_custom_call.1
$region0: #{tpu_custom_call.1}
  #allocation0 [shape = 'u32[]', space=smem, size = 0x4, offset = 0x4, fixed_abs, tag = 'smem constant byte address 0x4 - core index']
  #allocation1 [shape = 'u32[144,128]{1,0:T(1,128)}', space=vmem, size = 0x12000, scoped, tag = 'internal scratch']
  %s0 = inlined_call_operand.vmem [shape: f32[8,32], index: 0, kind: input, shape index: {}]
  %s1 = inlined_call_operand.vmem [shape: f32[32,16], index: 1, kind: input, shape index: {}]
  %s2 = inlined_call_operand.vmem [shape: f32[1,16], index: 2, kind: input, shape index: {}]
  %s3 = inlined_call_operand.hbm [shape: f32[8,16], index: 3, kind: output, shape index: {}]
  %s4 = sld [smem:[#allocation0]]
  $region22: #{tpu_custom_call.1} parent=0
    _
  %s6 = ssub.s32 1, %s4
  %s7 = scalar_select 0, %s6, %s4
  $region1: #{tpu_custom_call.1} parent=0
    #allocation2 [shape = 'u8[4096]{0}', space=vmem, size = 0x1000, scoped, tag = 'output window, operand 0, single buffered']
    #allocation3 [shape = 's32[1]{0}', space=sflag, size = 0x4, scoped, tag = 'scoped memory for tpu_custom_call.1']
    %8 = vsyncpa [#allocation3], 0
    // Predicated region
    $region2: #{tpu_custom_call.1} parent=1 // pred_check
      _
    $region3: #{tpu_custom_call.1} parent=1 // pred_check_branch
      %10 = sbr.rel (0) target = $region5
    $region4: #{tpu_custom_call.1} parent=1 // pred_region
      _
    $region5: #{tpu_custom_call.1} parent=1 // pred_fallthru
      _
    // Predicated region
    $region6: #{tpu_custom_call.1} parent=1 // pred_check
      _
    $region7: #{tpu_custom_call.1} parent=1 // pred_check_branch
      %12 = sbr.rel (0) target = $region9
    $region8: #{tpu_custom_call.1} parent=1 // pred_region
      _
    $region9: #{tpu_custom_call.1} parent=1 // pred_fallthru
      _
    // Predicated region
    $region10: #{tpu_custom_call.1} parent=1 // pred_check
      _
    $region11: #{tpu_custom_call.1} parent=1 // pred_check_branch
      %14 = sbr.rel (0) target = $region13
    $region12: #{tpu_custom_call.1} parent=1 // pred_region
      _
    $region13: #{tpu_custom_call.1} parent=1 // pred_fallthru
      _
    %v15 = vld [vmem:[%s0] sm:$0xff]
    %v16 = vld [vmem:[%s1] sm:$0xff]
    %v17 = vld [vmem:[%s1 + $0x8] sm:$0xff]
    %v18 = vld [vmem:[%s1 + $0x10] sm:$0xff]
    %v19 = vld [vmem:[%s1 + $0x18] sm:$0xff]
    %v20 = vld [vmem:[%s2] sm:$0x1]
    %v22 = vlaneseq
    %v23 = vshrl.u32 %v22, 7
    %v24 = vsub.s32 0, %v23
    %v25 = vrot.slane %v20, %v24
    %vm27 = vcmask 261120
    %v29 = vsel %vm27, %v15, 0
    %31 = vmatprep.subr.mxu0 0.0
    %32 = vmatpush1.msra.mxu0 0.0
    %33 = vmatprep.subr.mxu0 0.0
    %34 = vmatpush1.msra.mxu0 0.0
    %35 = vmatprep.subr.mxu0 0.0
    %36 = vmatpush1.msra.mxu0 0.0
    %37 = vmatprep.subr.mxu0 0.0
    %38 = vmatpush1.msra.mxu0 0.0
    %39 = vmatprep.subr.mxu0 0.0
    %40 = vmatpush1.msra.mxu0 0.0
    %41 = vmatprep.subr.mxu0 0.0
    %42 = vmatpush1.msra.mxu0 0.0
    %43 = vmatprep.subr.mxu0 0.0
    %44 = vmatpush1.msra.mxu0 0.0
    %45 = vmatprep.subr.mxu0 0.0
    %46 = vmatpush1.msra.mxu0 0.0
    %47 = vmatprep.subr.mxu0 0.0
    %48 = vmatpush1.msra.mxu0 0.0
    %49 = vmatprep.subr.mxu0 0.0
    %50 = vmatpush1.msra.mxu0 0.0
    %51 = vmatprep.subr.mxu0 0.0
    %52 = vmatpush1.msra.mxu0 0.0
    %53 = vmatprep.subr.mxu0 0.0
    %54 = vmatpush1.msra.mxu0 0.0
    %55 = vmatprep.subr.mxu0 0.0
    %56 = vmatpush1.msra.mxu0 %v19
    %57 = vmatprep.subr.mxu0 0.0
    %58 = vmatpush1.msra.mxu0 %v18
    %59 = vmatprep.subr.mxu0 0.0
    %60 = vmatpush1.msra.mxu0 %v17
    %61 = vmatprep.subr.mxu0 0.0
    %62 = vmatpush1.msra.mxu0 %v16
    %63 = vmatprep.subr.mxu0 0.0
    %64 = vmatpush2.msra.mxu0 0.0
    %65 = vmatprep.subr.mxu0 0.0
    %66 = vmatpush2.msra.mxu0 0.0
    %67 = vmatprep.subr.mxu0 0.0
    %68 = vmatpush2.msra.mxu0 0.0
    %69 = vmatprep.subr.mxu0 0.0
    %70 = vmatpush2.msra.mxu0 0.0
    %71 = vmatprep.subr.mxu0 0.0
    %72 = vmatpush2.msra.mxu0 0.0
    %73 = vmatprep.subr.mxu0 0.0
    %74 = vmatpush2.msra.mxu0 0.0
    %75 = vmatprep.subr.mxu0 0.0
    %76 = vmatpush2.msra.mxu0 0.0
    %77 = vmatprep.subr.mxu0 0.0
    %78 = vmatpush2.msra.mxu0 0.0
    %79 = vmatprep.subr.mxu0 0.0
    %80 = vmatpush2.msra.mxu0 0.0
    %81 = vmatprep.subr.mxu0 0.0
    %82 = vmatpush2.msra.mxu0 0.0
    %83 = vmatprep.subr.mxu0 0.0
    %84 = vmatpush2.msra.mxu0 0.0
    %85 = vmatprep.subr.mxu0 0.0
    %86 = vmatpush2.msra.mxu0 0.0
    %87 = vmatprep.subr.mxu0 0.0
    %88 = vmatpush2.msra.mxu0 0.0
    %89 = vmatprep.subr.mxu0 0.0
    %90 = vmatpush2.msra.mxu0 0.0
    %91 = vmatprep.subr.mxu0 0.0
    %92 = vmatpush2.msra.mxu0 0.0
    %93 = vmatprep.subr.mxu0 0.0
    %94 = vmatpush2.msra.mxu0 0.0
    %95 = vmatprep.mubr.f32.mxu0 0.0
    %96 = vmatmul.mubr.f32.gmra.mxu0 %v29
    %v97 = vpop.f32.mrf.mxu0
    %v98 = vadd.f32 %v25, %v97
    %v99 = vpop.f32.mrf.mxu0
    %100 = vdwg.mxu0
    %v101 = vmul.f32 %v98, 0.5
    %v102 = vxor.u32 %v101, 2147483648
    %v103 = vmul.f32 %v102, 1.442695
    %v104 = vpow.pop %v103
    %v105 = vadd.f32 %v104, 1.0
    %v106 = vrcp.pop %v105
    %v107 = vmul.f32 1.0, %v106
    %v108 = vmul.f32 %v107, 2.0
    %v109 = vadd.f32 %v108, 0.001
    %vm110 = vcmask 130048
    %111 = vst.msk [vmem:[#allocation2] sm:$0xff] %vm110, %v109
    // Predicated region
    $region14: #{tpu_custom_call.1} parent=1 // pred_check
      _
    $region15: #{tpu_custom_call.1} parent=1 // pred_check_branch
      %113 = sbr.rel (0) target = $region17
    $region16: #{tpu_custom_call.1} parent=1 // pred_region
      %s115 = ssub.s32 128, 128
      %116 = vsyncadd [#allocation3], %s115
      %s118 = sshll.u32 [#allocation2], 4
      %s119 = int_to_ptr.vmem [resolvable:$true] %s118
      %121 = dma.vmem_to_hbm [thread:$0]  %s119, 128, %s3, [#allocation3]
    $region17: #{tpu_custom_call.1} parent=1 // pred_fallthru
      _
    // Predicated region
    $region18: #{tpu_custom_call.1} parent=1 // pred_check
      _
    $region19: #{tpu_custom_call.1} parent=1 // pred_check_branch
      %123 = sbr.rel (0) target = $region21
    $region20: #{tpu_custom_call.1} parent=1 // pred_region
      %124 = dma.done [#allocation3], 128
    $region21: #{tpu_custom_call.1} parent=1 // pred_fallthru
      _
    %125 = vsyncpa [#allocation3], 1

</llo_original>
